<compile_context>
chip_gen: v7x
topology: tpu7x:2x2x1
jax: 0.10.0
libtpu: 0.0.40
codegen_flags: <defaults>
</compile_context>

<pallas_src>
import functools

import jax
import jax.numpy as jnp
from jax.experimental import pallas as pl
from jax.experimental.pallas import tpu as pltpu

_LANE = 128  # lane width (last-dim VMEM tiling unit)


def _round_up(n, m):
    return ((n + m - 1) // m) * m


# ---------------------------------------------------------------------------
# Kernel
# ---------------------------------------------------------------------------
def se_mlp_kernel(x_ref, w1_ref, b1_ref, w2_ref, b2_ref, o_ref):
    # x tile: (TILE_B, C). Cast to the matmul dtype in-kernel (VPU) -- no-op when
    # the weights are f32.
    x = x_ref[...].astype(w1_ref.dtype)

    # fc1 on the MXU with f32 accumulation; bias add / ReLU stay in f32
    # (v5e VPU has no bf16 path).
    h = jnp.dot(x, w1_ref[...], preferred_element_type=jnp.float32) + b1_ref[...]
    h = jnp.maximum(h, 0.0)

    # fc2 on the MXU (cast the activation back to the matmul dtype).
    y = jnp.dot(h.astype(w2_ref.dtype), w2_ref[...],
                preferred_element_type=jnp.float32) + b2_ref[...]

    # Stable sigmoid: clamp so exp never overflows, then exp (EUP) + approximate
    # reciprocal (EUP) instead of a VALU divide. sigmoid(+/-30) is 1 / ~1e-13,
    # well below f32 resolution of the gate.
    y = jnp.clip(y, -30.0, 30.0)
    o_ref[...] = pl.reciprocal(1.0 + jnp.exp(-y), approx=True).astype(o_ref.dtype)


# ---------------------------------------------------------------------------
# VMEM sizing / tiling
# ---------------------------------------------------------------------------
@functools.lru_cache(maxsize=None)
def _vmem_budget_and_limit():
    """(budget_bytes, vmem_limit_bytes) sized per TPU generation."""
    cap = None
    try:
        info = pltpu.get_tpu_info()
        cap = getattr(info, "vmem_capacity_bytes", None)
    except Exception:
        cap = None
    if cap is None:
        cap = 64 * 1024 * 1024  # conservative: assume v7x-sized VMEM
    if cap >= 128 * 1024 * 1024:  # v5e / v6e: 128 MiB physical
        return 80 * 1024 * 1024, 100 * 1024 * 1024
    # v7x: 64 MiB physical, 32 MiB scoped default -> raise the limit moderately.
    return 30 * 1024 * 1024, 48 * 1024 * 1024


def _pick_tile_b(B, C, H, x_bytes, mm_bytes, out_bytes, budget):
    """Largest batch tile (multiple of 8 sublanes) fitting the VMEM budget."""
    sublane = 8
    # VMEM tiles are laid out lane-padded, so footprints use the padded dims.
    C_l = _round_up(C, _LANE)
    H_l = _round_up(H, _LANE)

    # Resident weights/biases: Pallas double-buffers EVERY input, even with a
    # constant index_map, so count them twice.
    weight_bytes = 2 * (2 * C_l * H_l * mm_bytes + (H_l + C_l) * 4)

    # Per batch-row VMEM: double-buffered x and out tiles + f32 intermediates
    # (h, y) + the matmul-dtype casts of x / h.
    per_row = (2 * C_l * x_bytes + 2 * C_l * out_bytes
               + (H_l + C_l) * 4 + (C_l + H_l) * mm_bytes)

    avail = budget - weight_bytes - (1 << 20)  # 1 MiB compiler slack
    tile_b = max(sublane, (avail // per_row) // sublane * sublane)
    tile_b = min(tile_b, 2048)  # diminishing returns past ~1-2K rows

    # v7x megacore: keep at least 2 grid steps so the "parallel" batch axis can be
    # sharded across both TensorCores (no effect on single-TC v5e/v6e).
    if B >= 2 * sublane:
        tile_b = min(tile_b, _round_up((B + 1) // 2, sublane))

    tile_b = min(tile_b, _round_up(B, sublane))  # never bigger than the batch
    return int(tile_b)


# ---------------------------------------------------------------------------
# Wrapper
# ---------------------------------------------------------------------------
def prepare_params(w1, b1, w2, b2, matmul_dtype=jnp.float32):
    """One-time parameter prep (hoisted out of the forward hot path).

    Weights are cast to the matmul dtype, biases to f32 with shape (1, N).
    """
    mm = jnp.dtype(matmul_dtype)
    return (w1.astype(mm),
            b1.astype(jnp.float32).reshape(1, -1),
            w2.astype(mm),
            b2.astype(jnp.float32).reshape(1, -1))


@jax.jit
def se_attention_forward(x, w1, b1, w2, b2):
    """x: (B, C); w1: (C, H); b1: (1, H) f32; w2: (H, C); b2: (1, C) f32."""
    B, C = x.shape
    H = w1.shape[1]
    if b1.ndim == 1:
        b1 = b1.reshape(1, -1)
    if b2.ndim == 1:
        b2 = b2.reshape(1, -1)

    mm_bytes = jnp.dtype(w1.dtype).itemsize
    x_bytes = jnp.dtype(x.dtype).itemsize
    out_bytes = x_bytes

    budget, vmem_limit = _vmem_budget_and_limit()
    tile_b = _pick_tile_b(B, C, H, x_bytes, mm_bytes, out_bytes, budget)
    grid = (pl.cdiv(B, tile_b),)

    cost = pl.CostEstimate(
        flops=4 * B * C * H,                      # two matmuls, 2*B*C*H each
        transcendentals=2 * B * C,                # exp + reciprocal
        bytes_accessed=(x.size * x_bytes
                        + (w1.size + w2.size) * mm_bytes
                        + (b1.size + b2.size) * 4
                        + B * C * out_bytes),
    )

    return pl.pallas_call(
        se_mlp_kernel,
        out_shape=jax.ShapeDtypeStruct((B, C), x.dtype),
        grid=grid,
        in_specs=[
            # x: batch-tiled, full-extent feature dim (no wrapper pad/cast copy).
            pl.BlockSpec((tile_b, C), lambda i: (i, 0)),
            # Weights / biases: constant index_map -> VMEM-resident across grid.
            pl.BlockSpec((C, H), lambda i: (0, 0)),
            pl.BlockSpec((1, H), lambda i: (0, 0)),
            pl.BlockSpec((H, C), lambda i: (0, 0)),
            pl.BlockSpec((1, C), lambda i: (0, 0)),
        ],
        out_specs=pl.BlockSpec((tile_b, C), lambda i: (i, 0)),
        compiler_params=pltpu.CompilerParams(
            dimension_semantics=("parallel",),  # independent batch tiles
            vmem_limit_bytes=vmem_limit,
        ),
        cost_estimate=cost,
    )(x, w1, b1, w2, b2)


# ---------------------------------------------------------------------------
# Reference / init
# ---------------------------------------------------------------------------
def init_params(key, dim_size):
    """Deterministic init mimicking nn.Linear default (uniform +/- 1/sqrt(fan_in))."""
    channel = dim_size
    hidden = channel // 4  # reduction = 4
    k1, k2, k3, k4 = jax.random.split(key, 4)

    bound1 = 1.0 / jnp.sqrt(channel)
    bound2 = 1.0 / jnp.sqrt(hidden)

    # Stored as (in, out) so the kernel does x @ W.
    w1 = jax.random.uniform(k1, (channel, hidden), jnp.float32, -bound1, bound1)
    b1 = jax.random.uniform(k2, (hidden,), jnp.float32, -bound1, bound1)
    w2 = jax.random.uniform(k3, (hidden, channel), jnp.float32, -bound2, bound2)
    b2 = jax.random.uniform(k4, (channel,), jnp.float32, -bound2, bound2)
    return w1, b1, w2, b2


def reference_forward(x, w1, b1, w2, b2):
    h = jnp.maximum(x @ w1 + b1, 0.0)
    return jax.nn.sigmoid(h @ w2 + b2)


if __name__ == "__main__":
    key = jax.random.PRNGKey(0)
    kx, kp = jax.random.split(key)

    dim_size = 32          # channel = 32, hidden = 32 // 4 = 8
    batch = 8
    x = jax.random.normal(kx, (batch, dim_size), jnp.float32)
    w1, b1, w2, b2 = init_params(kp, dim_size)

    ref = reference_forward(x, w1, b1, w2, b2)

    # Default exact path (f32 matmuls); only the EUP approx reciprocal differs.
    p32 = prepare_params(w1, b1, w2, b2, matmul_dtype=jnp.float32)
    out_f32 = jax.block_until_ready(se_attention_forward(x, *p32))
    assert out_f32.shape == x.shape
    assert jnp.allclose(out_f32, ref, atol=5e-3, rtol=5e-3), "f32 path mismatch"

    # Opt-in fast path (bf16 matmuls, f32 accumulation / epilogue).
    pbf = prepare_params(w1, b1, w2, b2, matmul_dtype=jnp.bfloat16)
    out_bf16 = jax.block_until_ready(se_attention_forward(x, *pbf))
    assert out_bf16.shape == x.shape
    assert jnp.allclose(out_bf16, ref, atol=5e-2, rtol=5e-2), "bf16 path mismatch"

    print("KERNEL_OK")
</pallas_src>

<mosaic_0001>
module attributes {stable_mosaic.version = 11 : i64} {
  func.func @se_mlp_kernel(%arg0: i32, %arg1: memref<8x32xf32, #tpu.memory_space<vmem>>, %arg2: memref<32x8xf32, #tpu.memory_space<vmem>>, %arg3: memref<1x8xf32, #tpu.memory_space<vmem>>, %arg4: memref<8x32xf32, #tpu.memory_space<vmem>>, %arg5: memref<1x32xf32, #tpu.memory_space<vmem>>, %arg6: memref<8x32xf32, #tpu.memory_space<vmem>>) attributes {dimension_semantics = [#tpu.dimension_semantics<parallel>], iteration_bounds = array<i64: 1>, scalar_prefetch = 0 : i64, scratch_operands = 0 : i64, tpu.core_type = #tpu.core_type<tc>, window_params = [{transform_indices = @transform_0, window_bounds = array<i64: 8, 32>}, {pipeline_mode = #tpu.pipeline_mode<synchronous>, transform_indices = @transform_1, window_bounds = array<i64: 32, 8>}, {pipeline_mode = #tpu.pipeline_mode<synchronous>, transform_indices = @transform_2, window_bounds = array<i64: 1, 8>}, {pipeline_mode = #tpu.pipeline_mode<synchronous>, transform_indices = @transform_3, window_bounds = array<i64: 8, 32>}, {pipeline_mode = #tpu.pipeline_mode<synchronous>, transform_indices = @transform_4, window_bounds = array<i64: 1, 32>}, {transform_indices = @transform_5, window_bounds = array<i64: 8, 32>}]} {
    %c0 = arith.constant 0 : index
    %c0_0 = arith.constant 0 : index
    %0 = vector.load %arg1[%c0, %c0_0] : memref<8x32xf32, #tpu.memory_space<vmem>>, vector<8x32xf32>
    %c0_1 = arith.constant 0 : index
    %c0_2 = arith.constant 0 : index
    %1 = vector.load %arg2[%c0_1, %c0_2] : memref<32x8xf32, #tpu.memory_space<vmem>>, vector<32x8xf32>
    %cst = arith.constant dense<0.000000e+00> : vector<8x8xf32>
    %2 = tpu.matmul %0, %1, %cst {dimension_numbers = #tpu.dot_dimension_numbers<[1], [0], [0], [1], [0, 0, 1, 1], [], []>} : vector<8x32xf32>, vector<32x8xf32>, vector<8x8xf32> -> vector<8x8xf32>
    %c0_3 = arith.constant 0 : index
    %c0_4 = arith.constant 0 : index
    %3 = vector.load %arg3[%c0_3, %c0_4] : memref<1x8xf32, #tpu.memory_space<vmem>>, vector<1x8xf32>
    %4 = vector.broadcast %3 : vector<1x8xf32> to vector<8x8xf32>
    %5 = arith.addf %2, %4 : vector<8x8xf32>
    %cst_5 = arith.constant 0.000000e+00 : f32
    %6 = vector.broadcast %cst_5 : f32 to vector<8x8xf32>
    %7 = arith.maximumf %5, %6 : vector<8x8xf32>
    %c0_6 = arith.constant 0 : index
    %c0_7 = arith.constant 0 : index
    %8 = vector.load %arg4[%c0_6, %c0_7] : memref<8x32xf32, #tpu.memory_space<vmem>>, vector<8x32xf32>
    %cst_8 = arith.constant dense<0.000000e+00> : vector<8x32xf32>
    %9 = tpu.matmul %7, %8, %cst_8 {dimension_numbers = #tpu.dot_dimension_numbers<[1], [0], [0], [1], [0, 0, 1, 1], [], []>} : vector<8x8xf32>, vector<8x32xf32>, vector<8x32xf32> -> vector<8x32xf32>
    %c0_9 = arith.constant 0 : index
    %c0_10 = arith.constant 0 : index
    %10 = vector.load %arg5[%c0_9, %c0_10] : memref<1x32xf32, #tpu.memory_space<vmem>>, vector<1x32xf32>
    %11 = vector.broadcast %10 : vector<1x32xf32> to vector<8x32xf32>
    %12 = arith.addf %9, %11 : vector<8x32xf32>
    %cst_11 = arith.constant -3.000000e+01 : f32
    %cst_12 = arith.constant 3.000000e+01 : f32
    %13 = vector.broadcast %cst_11 : f32 to vector<8x32xf32>
    %14 = arith.maximumf %13, %12 : vector<8x32xf32>
    %15 = vector.broadcast %cst_12 : f32 to vector<8x32xf32>
    %16 = arith.minimumf %15, %14 : vector<8x32xf32>
    %cst_13 = arith.constant 0.000000e+00 : f32
    %17 = vector.broadcast %cst_13 : f32 to vector<8x32xf32>
    %18 = arith.subf %17, %16 : vector<8x32xf32>
    %19 = math.exp %18 : vector<8x32xf32>
    %cst_14 = arith.constant 1.000000e+00 : f32
    %20 = vector.broadcast %cst_14 : f32 to vector<8x32xf32>
    %21 = arith.addf %20, %19 : vector<8x32xf32>
    %22 = tpu.reciprocal %21 {approx = true} : vector<8x32xf32> -> vector<8x32xf32>
    %c0_15 = arith.constant 0 : index
    %c0_16 = arith.constant 0 : index
    %23 = vector.load %arg6[%c0_15, %c0_16] : memref<8x32xf32, #tpu.memory_space<vmem>>, vector<8x32xf32>
    tpu.vector_store %arg6[%c0_15, %c0_16], %22 {strides = array<i32>} : memref<8x32xf32, #tpu.memory_space<vmem>>, vector<8x32xf32>,
    return
  }
  func.func @transform_0(%arg0: i32) -> (i32, i32) {
    %c0_i32 = arith.constant 0 : i32
    %c0_i32_0 = arith.constant 0 : i32
    return %arg0, %c0_i32 : i32, i32
  }
  func.func @transform_1(%arg0: i32) -> (i32, i32) {
    %c0_i32 = arith.constant 0 : i32
    %c0_i32_0 = arith.constant 0 : i32
    %c0_i32_1 = arith.constant 0 : i32
    return %c0_i32, %c0_i32_0 : i32, i32
  }
  func.func @transform_2(%arg0: i32) -> (i32, i32) {
    %c0_i32 = arith.constant 0 : i32
    %c0_i32_0 = arith.constant 0 : i32
    %c0_i32_1 = arith.constant 0 : i32
    return %c0_i32, %c0_i32_0 : i32, i32
  }
  func.func @transform_3(%arg0: i32) -> (i32, i32) {
    %c0_i32 = arith.constant 0 : i32
    %c0_i32_0 = arith.constant 0 : i32
    %c0_i32_1 = arith.constant 0 : i32
    return %c0_i32, %c0_i32_0 : i32, i32
  }
  func.func @transform_4(%arg0: i32) -> (i32, i32) {
    %c0_i32 = arith.constant 0 : i32
    %c0_i32_0 = arith.constant 0 : i32
    %c0_i32_1 = arith.constant 0 : i32
    return %c0_i32, %c0_i32_0 : i32, i32
  }
  func.func @transform_5(%arg0: i32) -> (i32, i32) {
    %c0_i32 = arith.constant 0 : i32
    %c0_i32_0 = arith.constant 0 : i32
    return %arg0, %c0_i32 : i32, i32
  }
}

</mosaic_0001>

<llo_original>
// kernel: se_attention_forward.1
$region0: #{se_attention_forward.1}
  #allocation0 [shape = 'u32[]', space=smem, size = 0x4, offset = 0x4, fixed_abs, tag = 'smem constant byte address 0x4 - core index']
  #allocation1 [shape = 'u32[144,128]{1,0:T(1,128)}', space=vmem, size = 0x12000, scoped, tag = 'internal scratch']
  %s0 = inlined_call_operand.vmem [shape: f32[8,32], index: 0, kind: input, shape index: {}]
  %s1 = inlined_call_operand.vmem [shape: f32[32,8], index: 1, kind: input, shape index: {}]
  %s2 = inlined_call_operand.vmem [shape: f32[1,8], index: 2, kind: input, shape index: {}]
  %s3 = inlined_call_operand.vmem [shape: f32[8,32], index: 3, kind: input, shape index: {}]
  %s4 = inlined_call_operand.vmem [shape: f32[1,32], index: 4, kind: input, shape index: {}]
  %s5 = inlined_call_operand.hbm [shape: f32[8,32], index: 5, kind: output, shape index: {}]
  %s6 = sld [smem:[#allocation0]]
  $region30: #{se_attention_forward.1} parent=0
    _
  %s8 = ssub.s32 1, %s6
  %s9 = scalar_select 0, %s8, %s6
  $region1: #{se_attention_forward.1} parent=0
    #allocation2 [shape = 'u8[4096]{0}', space=vmem, size = 0x1000, scoped, tag = 'output window, operand 0, single buffered']
    #allocation3 [shape = 's32[1]{0}', space=sflag, size = 0x4, scoped, tag = 'scoped memory for se_attention_forward.1']
    %10 = vsyncpa [#allocation3], 0
    // Predicated region
    $region2: #{se_attention_forward.1} parent=1 // pred_check
      _
    $region3: #{se_attention_forward.1} parent=1 // pred_check_branch
      %12 = sbr.rel (0) target = $region5
    $region4: #{se_attention_forward.1} parent=1 // pred_region
      _
    $region5: #{se_attention_forward.1} parent=1 // pred_fallthru
      _
    // Predicated region
    $region6: #{se_attention_forward.1} parent=1 // pred_check
      _
    $region7: #{se_attention_forward.1} parent=1 // pred_check_branch
      %14 = sbr.rel (0) target = $region9
    $region8: #{se_attention_forward.1} parent=1 // pred_region
      _
    $region9: #{se_attention_forward.1} parent=1 // pred_fallthru
      _
    // Predicated region
    $region10: #{se_attention_forward.1} parent=1 // pred_check
      _
    $region11: #{se_attention_forward.1} parent=1 // pred_check_branch
      %16 = sbr.rel (0) target = $region13
    $region12: #{se_attention_forward.1} parent=1 // pred_region
      _
    $region13: #{se_attention_forward.1} parent=1 // pred_fallthru
      _
    // Predicated region
    $region14: #{se_attention_forward.1} parent=1 // pred_check
      _
    $region15: #{se_attention_forward.1} parent=1 // pred_check_branch
      %18 = sbr.rel (0) target = $region17
    $region16: #{se_attention_forward.1} parent=1 // pred_region
      _
    $region17: #{se_attention_forward.1} parent=1 // pred_fallthru
      _
    // Predicated region
    $region18: #{se_attention_forward.1} parent=1 // pred_check
      _
    $region19: #{se_attention_forward.1} parent=1 // pred_check_branch
      %20 = sbr.rel (0) target = $region21
    $region20: #{se_attention_forward.1} parent=1 // pred_region
      _
    $region21: #{se_attention_forward.1} parent=1 // pred_fallthru
      _
    %v21 = vld [vmem:[%s0] sm:$0xff]
    %v22 = vld [vmem:[%s1] sm:$0xff]
    %v23 = vld [vmem:[%s1 + $0x8] sm:$0xff]
    %v24 = vld [vmem:[%s1 + $0x10] sm:$0xff]
    %v25 = vld [vmem:[%s1 + $0x18] sm:$0xff]
    %v26 = vld [vmem:[%s2] sm:$0x1]
    %v28 = vlaneseq
    %v29 = vshrl.u32 %v28, 7
    %v30 = vsub.s32 0, %v29
    %v31 = vrot.slane %v26, %v30
    %vm33 = vcmask 261120
    %v35 = vsel %vm33, %v21, 0
    %37 = vmatprep.subr.mxu0 0.0
    %38 = vmatpush1.msra.mxu0 %v22
    %39 = vmatprep.subr.mxu0 0.0
    %40 = vmatpush1.msra.mxu0 %v23
    %41 = vmatprep.subr.mxu0 0.0
    %42 = vmatpush1.msra.mxu0 %v24
    %43 = vmatprep.subr.mxu0 0.0
    %44 = vmatpush1.msra.mxu0 %v25
    %45 = vmatprep.subr.mxu0 0.0
    %46 = vmatpush1.msra.mxu0 0.0
    %47 = vmatprep.subr.mxu0 0.0
    %48 = vmatpush1.msra.mxu0 0.0
    %49 = vmatprep.subr.mxu0 0.0
    %50 = vmatpush1.msra.mxu0 0.0
    %51 = vmatprep.subr.mxu0 0.0
    %52 = vmatpush1.msra.mxu0 0.0
    %53 = vmatprep.subr.mxu0 0.0
    %54 = vmatpush1.msra.mxu0 0.0
    %55 = vmatprep.subr.mxu0 0.0
    %56 = vmatpush1.msra.mxu0 0.0
    %57 = vmatprep.subr.mxu0 0.0
    %58 = vmatpush1.msra.mxu0 0.0
    %59 = vmatprep.subr.mxu0 0.0
    %60 = vmatpush1.msra.mxu0 0.0
    %61 = vmatprep.subr.mxu0 0.0
    %62 = vmatpush1.msra.mxu0 0.0
    %63 = vmatprep.subr.mxu0 0.0
    %64 = vmatpush1.msra.mxu0 0.0
    %65 = vmatprep.subr.mxu0 0.0
    %66 = vmatpush1.msra.mxu0 0.0
    %67 = vmatprep.subr.mxu0 0.0
    %68 = vmatpush1.msra.mxu0 0.0
    %69 = vmatprep.subr.mxu0 0.0
    %70 = vmatpush1.msra.mxu0 0.0
    %71 = vmatprep.subr.mxu0 0.0
    %72 = vmatpush1.msra.mxu0 0.0
    %73 = vmatprep.subr.mxu0 0.0
    %74 = vmatpush1.msra.mxu0 0.0
    %75 = vmatprep.subr.mxu0 0.0
    %76 = vmatpush1.msra.mxu0 0.0
    %77 = vmatprep.subr.mxu0 0.0
    %78 = vmatpush1.msra.mxu0 0.0
    %79 = vmatprep.subr.mxu0 0.0
    %80 = vmatpush1.msra.mxu0 0.0
    %81 = vmatprep.subr.mxu0 0.0
    %82 = vmatpush1.msra.mxu0 0.0
    %83 = vmatprep.subr.mxu0 0.0
    %84 = vmatpush1.msra.mxu0 0.0
    %85 = vmatprep.subr.mxu0 0.0
    %86 = vmatpush1.msra.mxu0 0.0
    %87 = vmatprep.subr.mxu0 0.0
    %88 = vmatpush1.msra.mxu0 0.0
    %89 = vmatprep.subr.mxu0 0.0
    %90 = vmatpush1.msra.mxu0 0.0
    %91 = vmatprep.subr.mxu0 0.0
    %92 = vmatpush1.msra.mxu0 0.0
    %93 = vmatprep.subr.mxu0 0.0
    %94 = vmatpush1.msra.mxu0 0.0
    %95 = vmatprep.subr.mxu0 0.0
    %96 = vmatpush1.msra.mxu0 0.0
    %97 = vmatprep.subr.mxu0 0.0
    %98 = vmatpush1.msra.mxu0 0.0
    %99 = vmatprep.subr.mxu0 0.0
    %100 = vmatpush1.msra.mxu0 0.0
    %101 = vmatprep.mubr.f32.mxu0 0.0
    %102 = vmatmul.mubr.f32.gmra.mrb[0].mxu0 %v35
    %v103 = vpop.f32.mrb[0].mxu0
    %v104 = vadd.f32 %v31, %v103
    %v105 = vpop.f32.mrb[0].mxu0
    %106 = vdwg.mxu0
    %v107 = vmax.f32 %v104, 0.0
    %v108 = vld [vmem:[%s3] sm:$0xff]
    %v109 = vld [vmem:[%s4] sm:$0x1]
    %v111 = vlaneseq
    %v112 = vshrl.u32 %v111, 7
    %v113 = vsub.s32 0, %v112
    %v114 = vrot.slane %v109, %v113
    %vm116 = vcmask 64512
    %v118 = vsel %vm116, %v107, 0
    %120 = vmatprep.subr.mxu0 0.0
    %121 = vmatpush1.msra.mxu0 %v108
    %122 = vmatprep.subr.mxu0 0.0
    %123 = vmatpush1.msra.mxu0 0.0
    %124 = vmatprep.subr.mxu0 0.0
    %125 = vmatpush1.msra.mxu0 0.0
    %126 = vmatprep.subr.mxu0 0.0
    %127 = vmatpush1.msra.mxu0 0.0
    %128 = vmatprep.subr.mxu0 0.0
    %129 = vmatpush1.msra.mxu0 0.0
    %130 = vmatprep.subr.mxu0 0.0
    %131 = vmatpush1.msra.mxu0 0.0
    %132 = vmatprep.subr.mxu0 0.0
    %133 = vmatpush1.msra.mxu0 0.0
    %134 = vmatprep.subr.mxu0 0.0
    %135 = vmatpush1.msra.mxu0 0.0
    %136 = vmatprep.subr.mxu0 0.0
    %137 = vmatpush1.msra.mxu0 0.0
    %138 = vmatprep.subr.mxu0 0.0
    %139 = vmatpush1.msra.mxu0 0.0
    %140 = vmatprep.subr.mxu0 0.0
    %141 = vmatpush1.msra.mxu0 0.0
    %142 = vmatprep.subr.mxu0 0.0
    %143 = vmatpush1.msra.mxu0 0.0
    %144 = vmatprep.subr.mxu0 0.0
    %145 = vmatpush1.msra.mxu0 0.0
    %146 = vmatprep.subr.mxu0 0.0
    %147 = vmatpush1.msra.mxu0 0.0
    %148 = vmatprep.subr.mxu0 0.0
    %149 = vmatpush1.msra.mxu0 0.0
    %150 = vmatprep.subr.mxu0 0.0
    %151 = vmatpush1.msra.mxu0 0.0
    %152 = vmatprep.subr.mxu0 0.0
    %153 = vmatpush1.msra.mxu0 0.0
    %154 = vmatprep.subr.mxu0 0.0
    %155 = vmatpush1.msra.mxu0 0.0
    %156 = vmatprep.subr.mxu0 0.0
    %157 = vmatpush1.msra.mxu0 0.0
    %158 = vmatprep.subr.mxu0 0.0
    %159 = vmatpush1.msra.mxu0 0.0
    %160 = vmatprep.subr.mxu0 0.0
    %161 = vmatpush1.msra.mxu0 0.0
    %162 = vmatprep.subr.mxu0 0.0
    %163 = vmatpush1.msra.mxu0 0.0
    %164 = vmatprep.subr.mxu0 0.0
    %165 = vmatpush1.msra.mxu0 0.0
    %166 = vmatprep.subr.mxu0 0.0
    %167 = vmatpush1.msra.mxu0 0.0
    %168 = vmatprep.subr.mxu0 0.0
    %169 = vmatpush1.msra.mxu0 0.0
    %170 = vmatprep.subr.mxu0 0.0
    %171 = vmatpush1.msra.mxu0 0.0
    %172 = vmatprep.subr.mxu0 0.0
    %173 = vmatpush1.msra.mxu0 0.0
    %174 = vmatprep.subr.mxu0 0.0
    %175 = vmatpush1.msra.mxu0 0.0
    %176 = vmatprep.subr.mxu0 0.0
    %177 = vmatpush1.msra.mxu0 0.0
    %178 = vmatprep.subr.mxu0 0.0
    %179 = vmatpush1.msra.mxu0 0.0
    %180 = vmatprep.subr.mxu0 0.0
    %181 = vmatpush1.msra.mxu0 0.0
    %182 = vmatprep.subr.mxu0 0.0
    %183 = vmatpush1.msra.mxu0 0.0
    %184 = vmatprep.mubr.f32.mxu0 0.0
    %185 = vmatmul.mubr.f32.gmra.mrb[0].mxu0 %v118
    %v186 = vpop.f32.mrb[0].mxu0
    %v187 = vadd.f32 %v114, %v186
    %v188 = vpop.f32.mrb[0].mxu0
    %189 = vdwg.mxu0
    %v190 = vmax.f32 %v187, -30.0
    %v191 = vmin.f32 %v190, 30.0
    %v192 = vsub.f32 0.0, %v191
    %v193 = vmul.f32 %v192, 1.442695
    %v194 = vpow.pop %v193
    %v195 = vadd.f32 %v194, 1.0
    %v196 = vrcp.pop %v195
    %197 = vst.msk [vmem:[#allocation2] sm:$0xff] %vm33, %v196
    // Predicated region
    $region22: #{se_attention_forward.1} parent=1 // pred_check
      _
    $region23: #{se_attention_forward.1} parent=1 // pred_check_branch
      %199 = sbr.rel (0) target = $region25
    $region24: #{se_attention_forward.1} parent=1 // pred_region
      %s201 = ssub.s32 128, 128
      %202 = vsyncadd [#allocation3], %s201
      %s204 = sshll.u32 [#allocation2], 4
      %s205 = int_to_ptr.vmem [resolvable:$true] %s204
      %207 = dma.vmem_to_hbm [thread:$0]  %s205, 128, %s5, [#allocation3]
    $region25: #{se_attention_forward.1} parent=1 // pred_fallthru
      _
    // Predicated region
    $region26: #{se_attention_forward.1} parent=1 // pred_check
      _
    $region27: #{se_attention_forward.1} parent=1 // pred_check_branch
      %209 = sbr.rel (0) target = $region29
    $region28: #{se_attention_forward.1} parent=1 // pred_region
      %210 = dma.done [#allocation3], 128
    $region29: #{se_attention_forward.1} parent=1 // pred_fallthru
      _
    %211 = vsyncpa [#allocation3], 1

</llo_original>
